<compile_context>
chip_gen: v5e
topology: v5e:2x2
jax: 0.10.0
libtpu: 0.0.40
codegen_flags: <defaults>
</compile_context>

<pallas_src>
import functools

import jax
import jax.numpy as jnp
from jax.experimental import pallas as pl
from jax.experimental.pallas import tpu as pltpu


def _gelu_pytorch_tanh(x):
    # Matches HF ACT2FN["gelu_pytorch_tanh"] / torch GELU(approximate="tanh").
    c = 0.7978845608028654  # sqrt(2/pi)
    return 0.5 * x * (1.0 + jnp.tanh(c * (x + 0.044715 * x * x * x)))


def _round_up(n, m):
    return ((n + m - 1) // m) * m


# ----------------------------------------------------------------------------
# Kernel body
# ----------------------------------------------------------------------------
def _mlp_kernel(x_ref, w_fc_ref, b_fc_ref, w_proj_ref, b_proj_ref, o_ref, acc_ref):
    """Grid: (M_tiles, I_tiles).  acc_ref: f32 [block_m, H] VMEM scratch."""
    i_blk = pl.program_id(1)

    @pl.when(i_blk == 0)
    def _():
        acc_ref[...] = jnp.zeros_like(acc_ref)

    # c_fc slice: [bm, H] @ [H, bi] -> [bm, bi]  (f32 accumulation on the MXU)
    h = jnp.dot(x_ref[...], w_fc_ref[...], preferred_element_type=jnp.float32)
    h = h + b_fc_ref[...].astype(jnp.float32)
    # Activation in f32 (EUP tanh).
    h = _gelu_pytorch_tanh(h)
    # c_proj slice: [bm, bi] @ [bi, H] -> accumulate into [bm, H] f32.
    acc_ref[...] += jnp.dot(h.astype(w_proj_ref.dtype), w_proj_ref[...],
                            preferred_element_type=jnp.float32)

    @pl.when(i_blk == pl.num_programs(1) - 1)
    def _():
        y = acc_ref[...] + b_proj_ref[...].astype(jnp.float32)
        # residual_dropout = 0.0 / eval mode -> identity.
        o_ref[...] = y.astype(o_ref.dtype)


# ----------------------------------------------------------------------------
# Jitted pallas_call wrapper (static tiling params)
# ----------------------------------------------------------------------------
@functools.partial(
    jax.jit,
    static_argnames=("block_m", "block_i", "vmem_limit_bytes", "single_buffer_xo"),
)
def _mlp_pallas(x2d, w_fc, b_fc, w_proj, b_proj, *,
                block_m, block_i, vmem_limit_bytes, single_buffer_xo):
    M, H = x2d.shape
    I = w_fc.shape[1]
    bm, bi = block_m, block_i

    M_pad = _round_up(M, bm)
    I_pad = _round_up(I, bi)
    if M_pad != M:
        x2d = jnp.pad(x2d, ((0, M_pad - M), (0, 0)))
    if I_pad != I:
        # Rare fallback (bi is normally chosen to divide I).  Zero-padded I
        # columns/rows contribute exactly 0 to the output.
        # TODO(synk): for odd intermediate sizes, pre-pad weights once outside
        # the jit so this per-call pad never triggers at large shapes.
        w_fc = jnp.pad(w_fc, ((0, 0), (0, I_pad - I)))
        b_fc = jnp.pad(b_fc, ((0, I_pad - I),))
        w_proj = jnp.pad(w_proj, ((0, I_pad - I), (0, 0)))

    # Biases as 2-D rows so they broadcast cleanly over rows in VMEM.
    b_fc2 = b_fc.reshape(1, I_pad)
    b_proj2 = b_proj.reshape(1, H)

    grid = (M_pad // bm, I_pad // bi)
    n_m_tiles = grid[0]

    x_isz = jnp.dtype(x2d.dtype).itemsize
    w_isz = jnp.dtype(w_fc.dtype).itemsize
    cost = pl.CostEstimate(
        flops=4 * M * H * I,
        transcendentals=M * I,
        # Weights are re-streamed once per m-tile (x/out read/written once).
        bytes_accessed=int(2 * M * H * x_isz
                           + n_m_tiles * 2 * H * I * w_isz
                           + (I + H) * w_isz),
    )

    # x / out are invariant over the inner (I) grid axis -> single-buffer them
    # to free VMEM for bigger M tiles (DMA only fires once per I-sweep).
    if single_buffer_xo:
        x_spec = pl.BlockSpec((bm, H), lambda i, j: (i, 0),
                              pipeline_mode=pl.Buffered(1))
        out_spec = pl.BlockSpec((bm, H), lambda i, j: (i, 0),
                                pipeline_mode=pl.Buffered(1))
    else:
        x_spec = pl.BlockSpec((bm, H), lambda i, j: (i, 0))
        out_spec = pl.BlockSpec((bm, H), lambda i, j: (i, 0))

    out2d = pl.pallas_call(
        _mlp_kernel,
        out_shape=jax.ShapeDtypeStruct((M_pad, H), x2d.dtype),
        grid_spec=pltpu.PrefetchScalarGridSpec(
            num_scalar_prefetch=0,
            grid=grid,
            in_specs=[
                x_spec,                                        # x tile (const over j)
                pl.BlockSpec((H, bi), lambda i, j: (0, j)),    # W_fc column block
                pl.BlockSpec((1, bi), lambda i, j: (0, j)),    # b_fc block
                pl.BlockSpec((bi, H), lambda i, j: (j, 0)),    # W_proj row block
                pl.BlockSpec((1, H), lambda i, j: (0, 0)),     # b_proj
            ],
            out_specs=out_spec,
            scratch_shapes=[pltpu.VMEM((bm, H), jnp.float32)],
        ),
        compiler_params=pltpu.CompilerParams(
            dimension_semantics=("parallel", "arbitrary"),
            vmem_limit_bytes=int(vmem_limit_bytes),
        ),
        cost_estimate=cost,
    )(x2d, w_fc, b_fc2, w_proj, b_proj2)

    if M_pad != M:
        out2d = out2d[:M]
    return out2d


# ----------------------------------------------------------------------------
# Generation-aware configuration
# ----------------------------------------------------------------------------
def _tpu_vmem_bytes():
    try:
        info = pltpu.get_tpu_info()
        vmem = getattr(info, "vmem_capacity_bytes", None)
        if vmem:
            return int(vmem)
    except Exception:
        pass
    return 64 * 1024 * 1024  # conservative default (v7x-sized part)


def _default_tiles(vmem_cap):
    """Returns (block_m, block_i, vmem_limit_bytes) for this part."""
    if vmem_cap >= 96 * 1024 * 1024:
        # 128 MiB parts (v5e / v6e): push arithmetic intensity toward the
        # compute roofline with large M tiles.
        return 768, 512, min(vmem_cap - 24 * 1024 * 1024, 104 * 1024 * 1024)
    # 64 MiB per-TC parts (v7x): leave headroom for compiler scratch.
    return 512, 256, min(max(vmem_cap - 8 * 1024 * 1024, 32 * 1024 * 1024),
                         56 * 1024 * 1024)


def _pick_bi(intermediate, target):
    """Largest multiple of 128 that divides `intermediate` and is <= target."""
    best = None
    d = 128
    limit = min(intermediate, target)
    while d <= limit:
        if intermediate % d == 0:
            best = d
        d += 128
    return best


# ----------------------------------------------------------------------------
# Public entry point
# ----------------------------------------------------------------------------
def starcoder2_mlp(hidden_states, w_fc, b_fc, w_proj, b_proj,
                   *, block_m=None, block_i=None, vmem_limit_bytes=None):
    """hidden_states: [B, S, H]; w_fc: [H, I]; b_fc: [I]; w_proj: [I, H]; b_proj: [H]."""
    B, S, H = hidden_states.shape
    I = w_fc.shape[1]
    M = B * S
    x2d = hidden_states.reshape(M, H)

    vmem_cap = _tpu_vmem_bytes()
    bm_d, bi_d, limit_d = _default_tiles(vmem_cap)
    if block_m is None:
        block_m = bm_d
    if block_i is None:
        block_i = bi_d
    if vmem_limit_bytes is None:
        vmem_limit_bytes = limit_d

    x_isz = jnp.dtype(hidden_states.dtype).itemsize
    w_isz = jnp.dtype(w_fc.dtype).itemsize
    # Sublane packing: 8 rows/f32, 16 rows/bf16, 32 rows/8-bit per packed tile.
    min_m = 8 * max(1, 4 // max(x_isz, 1))

    # Clamp bm for small M.
    bm = min(block_m, _round_up(M, min_m))
    # Heuristic: 64 MiB/TC parts (v7x) have 2 TensorCores -> make sure the
    # 'parallel' M axis has >= 2 tiles so both cores get work.
    two_tc = vmem_cap <= 80 * 1024 * 1024
    if two_tc and M > min_m and _round_up(M, bm) // bm < 2:
        bm = min(bm, max(min_m, _round_up((M + 1) // 2, min_m)))

    # Pick bi so it divides I (no per-call weight padding).
    if I <= 128:
        bi = I
    else:
        bi = _pick_bi(I, min(block_i, I))
        if bi is None:
            bi = min(block_i, _round_up(I, 128))  # fallback: padding path

    # Shrink tiles until the estimated VMEM footprint fits the scoped limit
    # (handles f32 weights / unusual shapes gracefully).
    def _fits(bm_, bi_):
        xio = bm_ * H * (2 * x_isz)              # x + out, single-buffered
        wts = 2 * (H * bi_) * w_isz * 2          # W_fc + W_proj, double-buffered
        acc = bm_ * H * 4                        # f32 accumulator
        return xio + wts + acc <= int(0.85 * vmem_limit_bytes)

    while not _fits(bm, bi) and bm > min_m:
        bm = max(min_m, _round_up(bm // 2, min_m))
    while not _fits(bm, bi) and bi > 128:
        nbi = _pick_bi(I, bi // 2)
        if nbi is None or nbi == bi:
            break
        bi = nbi

    kwargs = dict(block_m=int(bm), block_i=int(bi),
                  vmem_limit_bytes=int(vmem_limit_bytes))
    try:
        out2d = _mlp_pallas(x2d, w_fc, b_fc, w_proj, b_proj,
                            single_buffer_xo=True, **kwargs)
    except Exception:
        # pl.Buffered(1) unsupported in this build -> default double buffering.
        out2d = _mlp_pallas(x2d, w_fc, b_fc, w_proj, b_proj,
                            single_buffer_xo=False, **kwargs)
    return out2d.reshape(B, S, H)


def _reference(hidden_states, w_fc, b_fc, w_proj, b_proj):
    h = hidden_states @ w_fc + b_fc
    h = _gelu_pytorch_tanh(h)
    return h @ w_proj + b_proj


if __name__ == "__main__":
    # Small config consistent with Starcoder2MLP:
    #   hidden_size (embed_dim) = 32, intermediate_size = 128, use_bias = True,
    #   hidden_act = "gelu_pytorch_tanh", residual_dropout = 0.0 (eval mode).
    B, S, H, I = 2, 8, 32, 128

    key = jax.random.PRNGKey(0)
    k_x, k_wfc, k_bfc, k_wpj, k_bpj = jax.random.split(key, 5)

    x = jax.random.normal(k_x, (B, S, H), dtype=jnp.float32)
    # Deterministic synthetic parameters (stored as [in, out]).
    w_fc = jax.random.normal(k_wfc, (H, I), dtype=jnp.float32) * 0.02
    b_fc = jax.random.normal(k_bfc, (I,), dtype=jnp.float32) * 0.01
    w_proj = jax.random.normal(k_wpj, (I, H), dtype=jnp.float32) * 0.02
    b_proj = jax.random.normal(k_bpj, (H,), dtype=jnp.float32) * 0.01

    ref = _reference(x, w_fc, b_fc, w_proj, b_proj)

    # f32 path (tight tolerance vs the pure-JAX reference).
    out = jax.block_until_ready(starcoder2_mlp(x, w_fc, b_fc, w_proj, b_proj))
    assert out.shape == (B, S, H)
    assert jnp.allclose(out, ref, atol=1e-5, rtol=1e-5), "f32 mismatch vs reference"

    # bf16 path (intended deployment dtype; f32 accumulation inside the kernel).
    xb, wfb, bfb, wpb, bpb = (t.astype(jnp.bfloat16)
                              for t in (x, w_fc, b_fc, w_proj, b_proj))
    out_bf = jax.block_until_ready(starcoder2_mlp(xb, wfb, bfb, wpb, bpb))
    assert out_bf.shape == (B, S, H)
    assert jnp.allclose(out_bf.astype(jnp.float32), ref, atol=2e-2, rtol=2e-2), \
        "bf16 mismatch vs reference"

    print("KERNEL_OK")
</pallas_src>

<mosaic_0001>
module attributes {stable_mosaic.version = 11 : i64} {
  func.func @_mlp_kernel(%arg0: i32, %arg1: i32, %arg2: memref<8x32xf32, #tpu.memory_space<vmem>>, %arg3: memref<32x128xf32, #tpu.memory_space<vmem>>, %arg4: memref<1x128xf32, #tpu.memory_space<vmem>>, %arg5: memref<128x32xf32, #tpu.memory_space<vmem>>, %arg6: memref<1x32xf32, #tpu.memory_space<vmem>>, %arg7: memref<8x32xf32, #tpu.memory_space<vmem>>, %arg8: memref<8x32xf32, #tpu.memory_space<vmem>>) attributes {dimension_semantics = [#tpu.dimension_semantics<parallel>, #tpu.dimension_semantics<arbitrary>], iteration_bounds = array<i64: 2, 1>, scalar_prefetch = 0 : i64, scratch_operands = 1 : i64, tpu.core_type = #tpu.core_type<tc>, window_params = [{pipeline_mode = #tpu.pipeline_mode<synchronous>, transform_indices = @transform_0, window_bounds = array<i64: 8, 32>}, {transform_indices = @transform_1, window_bounds = array<i64: 32, 128>}, {transform_indices = @transform_2, window_bounds = array<i64: 1, 128>}, {transform_indices = @transform_3, window_bounds = array<i64: 128, 32>}, {pipeline_mode = #tpu.pipeline_mode<synchronous>, transform_indices = @transform_4, window_bounds = array<i64: 1, 32>}, {pipeline_mode = #tpu.pipeline_mode<synchronous>, transform_indices = @transform_5, window_bounds = array<i64: 8, 32>}]} {
    %c0_i32 = arith.constant 0 : i32
    %0 = arith.cmpi eq, %arg1, %c0_i32 : i32
    %1 = arith.extui %0 : i1 to i32
    %c0_i32_0 = arith.constant 0 : i32
    %2 = arith.cmpi ne, %1, %c0_i32_0 : i32
    scf.if %2 {
      %cst_19 = arith.constant 0.000000e+00 : f32
      %30 = vector.broadcast %cst_19 : f32 to vector<8x32xf32>
      %c0_20 = arith.constant 0 : index
      %c0_21 = arith.constant 0 : index
      %31 = vector.load %arg8[%c0_20, %c0_21] : memref<8x32xf32, #tpu.memory_space<vmem>>, vector<8x32xf32>
      tpu.vector_store %arg8[%c0_20, %c0_21], %30 {strides = array<i32>} : memref<8x32xf32, #tpu.memory_space<vmem>>, vector<8x32xf32>,
    } else {
    }
    %c0 = arith.constant 0 : index
    %c0_1 = arith.constant 0 : index
    %3 = vector.load %arg2[%c0, %c0_1] : memref<8x32xf32, #tpu.memory_space<vmem>>, vector<8x32xf32>
    %c0_2 = arith.constant 0 : index
    %c0_3 = arith.constant 0 : index
    %4 = vector.load %arg3[%c0_2, %c0_3] : memref<32x128xf32, #tpu.memory_space<vmem>>, vector<32x128xf32>
    %cst = arith.constant dense<0.000000e+00> : vector<8x128xf32>
    %5 = tpu.matmul %3, %4, %cst {dimension_numbers = #tpu.dot_dimension_numbers<[1], [0], [0], [1], [0, 0, 1, 1], [], []>} : vector<8x32xf32>, vector<32x128xf32>, vector<8x128xf32> -> vector<8x128xf32>
    %c0_4 = arith.constant 0 : index
    %c0_5 = arith.constant 0 : index
    %6 = vector.load %arg4[%c0_4, %c0_5] : memref<1x128xf32, #tpu.memory_space<vmem>>, vector<1x128xf32>
    %7 = vector.broadcast %6 : vector<1x128xf32> to vector<8x128xf32>
    %8 = arith.addf %5, %7 : vector<8x128xf32>
    %cst_6 = arith.constant 5.000000e-01 : f32
    %9 = vector.broadcast %cst_6 : f32 to vector<8x128xf32>
    %10 = arith.mulf %9, %8 : vector<8x128xf32>
    %cst_7 = arith.constant 4.471500e-02 : f32
    %11 = vector.broadcast %cst_7 : f32 to vector<8x128xf32>
    %12 = arith.mulf %11, %8 : vector<8x128xf32>
    %13 = arith.mulf %12, %8 : vector<8x128xf32>
    %14 = arith.mulf %13, %8 : vector<8x128xf32>
    %15 = arith.addf %8, %14 : vector<8x128xf32>
    %cst_8 = arith.constant 0.797884583 : f32
    %16 = vector.broadcast %cst_8 : f32 to vector<8x128xf32>
    %17 = arith.mulf %16, %15 : vector<8x128xf32>
    %18 = math.tanh %17 : vector<8x128xf32>
    %cst_9 = arith.constant 1.000000e+00 : f32
    %19 = vector.broadcast %cst_9 : f32 to vector<8x128xf32>
    %20 = arith.addf %19, %18 : vector<8x128xf32>
    %21 = arith.mulf %10, %20 : vector<8x128xf32>
    %c0_10 = arith.constant 0 : index
    %c0_11 = arith.constant 0 : index
    %22 = vector.load %arg8[%c0_10, %c0_11] : memref<8x32xf32, #tpu.memory_space<vmem>>, vector<8x32xf32>
    %c0_12 = arith.constant 0 : index
    %c0_13 = arith.constant 0 : index
    %23 = vector.load %arg5[%c0_12, %c0_13] : memref<128x32xf32, #tpu.memory_space<vmem>>, vector<128x32xf32>
    %cst_14 = arith.constant dense<0.000000e+00> : vector<8x32xf32>
    %24 = tpu.matmul %21, %23, %cst_14 {dimension_numbers = #tpu.dot_dimension_numbers<[1], [0], [0], [1], [0, 0, 1, 1], [], []>} : vector<8x128xf32>, vector<128x32xf32>, vector<8x32xf32> -> vector<8x32xf32>
    %25 = arith.addf %22, %24 : vector<8x32xf32>
    %c0_15 = arith.constant 0 : index
    %c0_16 = arith.constant 0 : index
    %26 = vector.load %arg8[%c0_15, %c0_16] : memref<8x32xf32, #tpu.memory_space<vmem>>, vector<8x32xf32>
    tpu.vector_store %arg8[%c0_15, %c0_16], %25 {strides = array<i32>} : memref<8x32xf32, #tpu.memory_space<vmem>>, vector<8x32xf32>,
    %c0_i32_17 = arith.constant 0 : i32
    %27 = arith.cmpi eq, %arg1, %c0_i32_17 : i32
    %28 = arith.extui %27 : i1 to i32
    %c0_i32_18 = arith.constant 0 : i32
    %29 = arith.cmpi ne, %28, %c0_i32_18 : i32
    scf.if %29 {
      %c0_19 = arith.constant 0 : index
      %c0_20 = arith.constant 0 : index
      %30 = vector.load %arg8[%c0_19, %c0_20] : memref<8x32xf32, #tpu.memory_space<vmem>>, vector<8x32xf32>
      %c0_21 = arith.constant 0 : index
      %c0_22 = arith.constant 0 : index
      %31 = vector.load %arg6[%c0_21, %c0_22] : memref<1x32xf32, #tpu.memory_space<vmem>>, vector<1x32xf32>
      %32 = vector.broadcast %31 : vector<1x32xf32> to vector<8x32xf32>
      %33 = arith.addf %30, %32 : vector<8x32xf32>
      %c0_23 = arith.constant 0 : index
      %c0_24 = arith.constant 0 : index
      %34 = vector.load %arg7[%c0_23, %c0_24] : memref<8x32xf32, #tpu.memory_space<vmem>>, vector<8x32xf32>
      tpu.vector_store %arg7[%c0_23, %c0_24], %33 {strides = array<i32>} : memref<8x32xf32, #tpu.memory_space<vmem>>, vector<8x32xf32>,
    } else {
    }
    return
  }
  func.func @transform_0(%arg0: i32, %arg1: i32) -> (i32, i32) {
    %c0_i32 = arith.constant 0 : i32
    %c0_i32_0 = arith.constant 0 : i32
    return %arg0, %c0_i32 : i32, i32
  }
  func.func @transform_1(%arg0: i32, %arg1: i32) -> (i32, i32) {
    %c0_i32 = arith.constant 0 : i32
    %c0_i32_0 = arith.constant 0 : i32
    return %c0_i32, %arg1 : i32, i32
  }
  func.func @transform_2(%arg0: i32, %arg1: i32) -> (i32, i32) {
    %c0_i32 = arith.constant 0 : i32
    %c0_i32_0 = arith.constant 0 : i32
    return %c0_i32, %arg1 : i32, i32
  }
  func.func @transform_3(%arg0: i32, %arg1: i32) -> (i32, i32) {
    %c0_i32 = arith.constant 0 : i32
    %c0_i32_0 = arith.constant 0 : i32
    return %arg1, %c0_i32 : i32, i32
  }
  func.func @transform_4(%arg0: i32, %arg1: i32) -> (i32, i32) {
    %c0_i32 = arith.constant 0 : i32
    %c0_i32_0 = arith.constant 0 : i32
    %c0_i32_1 = arith.constant 0 : i32
    return %c0_i32, %c0_i32_0 : i32, i32
  }
  func.func @transform_5(%arg0: i32, %arg1: i32) -> (i32, i32) {
    %c0_i32 = arith.constant 0 : i32
    %c0_i32_0 = arith.constant 0 : i32
    return %arg0, %c0_i32 : i32, i32
  }
}

module attributes {stable_mosaic.version = 11 : i64} {
  func.func @_mlp_kernel(%arg0: i32, %arg1: i32, %arg2: memref<8x32xf32, #tpu.memory_space<vmem>>, %arg3: memref<32x128xf32, #tpu.memory_space<vmem>>, %arg4: memref<1x128xf32, #tpu.memory_space<vmem>>, %arg5: memref<128x32xf32, #tpu.memory_space<vmem>>, %arg6: memref<1x32xf32, #tpu.memory_space<vmem>>, %arg7: memref<8x32xf32, #tpu.memory_space<vmem>>, %arg8: memref<8x32xf32, #tpu.memory_space<vmem>>) attributes {dimension_semantics = [#tpu.dimension_semantics<parallel>, #tpu.dimension_semantics<arbitrary>], iteration_bounds = array<i64: 2, 1>, scalar_prefetch = 0 : i64, scratch_operands = 1 : i64, tpu.core_type = #tpu.core_type<tc>, window_params = [{transform_indices = @transform_0, window_bounds = array<i64: 8, 32>}, {transform_indices = @transform_1, window_bounds = array<i64: 32, 128>}, {transform_indices = @transform_2, window_bounds = array<i64: 1, 128>}, {transform_indices = @transform_3, window_bounds = array<i64: 128, 32>}, {pipeline_mode = #tpu.pipeline_mode<synchronous>, transform_indices = @transform_4, window_bounds = array<i64: 1, 32>}, {transform_indices = @transform_5, window_bounds = array<i64: 8, 32>}]} {
    %c0_i32 = arith.constant 0 : i32
    %0 = arith.cmpi eq, %arg1, %c0_i32 : i32
    %1 = arith.extui %0 : i1 to i32
    %c0_i32_0 = arith.constant 0 : i32
    %2 = arith.cmpi ne, %1, %c0_i32_0 : i32
    scf.if %2 {
      %cst_19 = arith.constant 0.000000e+00 : f32
      %30 = vector.broadcast %cst_19 : f32 to vector<8x32xf32>
      %c0_20 = arith.constant 0 : index
      %c0_21 = arith.constant 0 : index
      %31 = vector.load %arg8[%c0_20, %c0_21] : memref<8x32xf32, #tpu.memory_space<vmem>>, vector<8x32xf32>
      tpu.vector_store %arg8[%c0_20, %c0_21], %30 {strides = array<i32>} : memref<8x32xf32, #tpu.memory_space<vmem>>, vector<8x32xf32>,
    } else {
    }
    %c0 = arith.constant 0 : index
    %c0_1 = arith.constant 0 : index
    %3 = vector.load %arg2[%c0, %c0_1] : memref<8x32xf32, #tpu.memory_space<vmem>>, vector<8x32xf32>
    %c0_2 = arith.constant 0 : index
    %c0_3 = arith.constant 0 : index
    %4 = vector.load %arg3[%c0_2, %c0_3] : memref<32x128xf32, #tpu.memory_space<vmem>>, vector<32x128xf32>
    %cst = arith.constant dense<0.000000e+00> : vector<8x128xf32>
    %5 = tpu.matmul %3, %4, %cst {dimension_numbers = #tpu.dot_dimension_numbers<[1], [0], [0], [1], [0, 0, 1, 1], [], []>} : vector<8x32xf32>, vector<32x128xf32>, vector<8x128xf32> -> vector<8x128xf32>
    %c0_4 = arith.constant 0 : index
    %c0_5 = arith.constant 0 : index
    %6 = vector.load %arg4[%c0_4, %c0_5] : memref<1x128xf32, #tpu.memory_space<vmem>>, vector<1x128xf32>
    %7 = vector.broadcast %6 : vector<1x128xf32> to vector<8x128xf32>
    %8 = arith.addf %5, %7 : vector<8x128xf32>
    %cst_6 = arith.constant 5.000000e-01 : f32
    %9 = vector.broadcast %cst_6 : f32 to vector<8x128xf32>
    %10 = arith.mulf %9, %8 : vector<8x128xf32>
    %cst_7 = arith.constant 4.471500e-02 : f32
    %11 = vector.broadcast %cst_7 : f32 to vector<8x128xf32>
    %12 = arith.mulf %11, %8 : vector<8x128xf32>
    %13 = arith.mulf %12, %8 : vector<8x128xf32>
    %14 = arith.mulf %13, %8 : vector<8x128xf32>
    %15 = arith.addf %8, %14 : vector<8x128xf32>
    %cst_8 = arith.constant 0.797884583 : f32
    %16 = vector.broadcast %cst_8 : f32 to vector<8x128xf32>
    %17 = arith.mulf %16, %15 : vector<8x128xf32>
    %18 = math.tanh %17 : vector<8x128xf32>
    %cst_9 = arith.constant 1.000000e+00 : f32
    %19 = vector.broadcast %cst_9 : f32 to vector<8x128xf32>
    %20 = arith.addf %19, %18 : vector<8x128xf32>
    %21 = arith.mulf %10, %20 : vector<8x128xf32>
    %c0_10 = arith.constant 0 : index
    %c0_11 = arith.constant 0 : index
    %22 = vector.load %arg8[%c0_10, %c0_11] : memref<8x32xf32, #tpu.memory_space<vmem>>, vector<8x32xf32>
    %c0_12 = arith.constant 0 : index
    %c0_13 = arith.constant 0 : index
    %23 = vector.load %arg5[%c0_12, %c0_13] : memref<128x32xf32, #tpu.memory_space<vmem>>, vector<128x32xf32>
    %cst_14 = arith.constant dense<0.000000e+00> : vector<8x32xf32>
    %24 = tpu.matmul %21, %23, %cst_14 {dimension_numbers = #tpu.dot_dimension_numbers<[1], [0], [0], [1], [0, 0, 1, 1], [], []>} : vector<8x128xf32>, vector<128x32xf32>, vector<8x32xf32> -> vector<8x32xf32>
    %25 = arith.addf %22, %24 : vector<8x32xf32>
    %c0_15 = arith.constant 0 : index
    %c0_16 = arith.constant 0 : index
    %26 = vector.load %arg8[%c0_15, %c0_16] : memref<8x32xf32, #tpu.memory_space<vmem>>, vector<8x32xf32>
    tpu.vector_store %arg8[%c0_15, %c0_16], %25 {strides = array<i32>} : memref<8x32xf32, #tpu.memory_space<vmem>>, vector<8x32xf32>,
    %c0_i32_17 = arith.constant 0 : i32
    %27 = arith.cmpi eq, %arg1, %c0_i32_17 : i32
    %28 = arith.extui %27 : i1 to i32
    %c0_i32_18 = arith.constant 0 : i32
    %29 = arith.cmpi ne, %28, %c0_i32_18 : i32
    scf.if %29 {
      %c0_19 = arith.constant 0 : index
      %c0_20 = arith.constant 0 : index
      %30 = vector.load %arg8[%c0_19, %c0_20] : memref<8x32xf32, #tpu.memory_space<vmem>>, vector<8x32xf32>
      %c0_21 = arith.constant 0 : index
      %c0_22 = arith.constant 0 : index
      %31 = vector.load %arg6[%c0_21, %c0_22] : memref<1x32xf32, #tpu.memory_space<vmem>>, vector<1x32xf32>
      %32 = vector.broadcast %31 : vector<1x32xf32> to vector<8x32xf32>
      %33 = arith.addf %30, %32 : vector<8x32xf32>
      %c0_23 = arith.constant 0 : index
      %c0_24 = arith.constant 0 : index
      %34 = vector.load %arg7[%c0_23, %c0_24] : memref<8x32xf32, #tpu.memory_space<vmem>>, vector<8x32xf32>
      tpu.vector_store %arg7[%c0_23, %c0_24], %33 {strides = array<i32>} : memref<8x32xf32, #tpu.memory_space<vmem>>, vector<8x32xf32>,
    } else {
    }
    return
  }
  func.func @transform_0(%arg0: i32, %arg1: i32) -> (i32, i32) {
    %c0_i32 = arith.constant 0 : i32
    %c0_i32_0 = arith.constant 0 : i32
    return %arg0, %c0_i32 : i32, i32
  }
  func.func @transform_1(%arg0: i32, %arg1: i32) -> (i32, i32) {
    %c0_i32 = arith.constant 0 : i32
    %c0_i32_0 = arith.constant 0 : i32
    return %c0_i32, %arg1 : i32, i32
  }
  func.func @transform_2(%arg0: i32, %arg1: i32) -> (i32, i32) {
    %c0_i32 = arith.constant 0 : i32
    %c0_i32_0 = arith.constant 0 : i32
    return %c0_i32, %arg1 : i32, i32
  }
  func.func @transform_3(%arg0: i32, %arg1: i32) -> (i32, i32) {
    %c0_i32 = arith.constant 0 : i32
    %c0_i32_0 = arith.constant 0 : i32
    return %arg1, %c0_i32 : i32, i32
  }
  func.func @transform_4(%arg0: i32, %arg1: i32) -> (i32, i32) {
    %c0_i32 = arith.constant 0 : i32
    %c0_i32_0 = arith.constant 0 : i32
    %c0_i32_1 = arith.constant 0 : i32
    return %c0_i32, %c0_i32_0 : i32, i32
  }
  func.func @transform_5(%arg0: i32, %arg1: i32) -> (i32, i32) {
    %c0_i32 = arith.constant 0 : i32
    %c0_i32_0 = arith.constant 0 : i32
    return %arg0, %c0_i32 : i32, i32
  }
}

</mosaic_0001>

<llo_original>
// kernel: _mlp_pallas.1
$region0: #{_mlp_pallas.1}
  #allocation0 [shape = 'u32[]', space=smem, size = 0x4, offset = 0x4, fixed_abs, tag = 'smem constant byte address 0x4 - core index']
  #allocation1 [shape = 'u32[72,128]{1,0:T(1,128)}', space=vmem, size = 0x9000, scoped, tag = 'internal scratch']
  #allocation2 [shape = 'f32[8,32]{1,0:T(8,128)}', space=vmem, size = 0x1000, scoped, tag = 'scratch operand']
  %s0 = inlined_call_operand.vmem [shape: f32[16,32], index: 0, kind: input, shape index: {}]
  %s1 = inlined_call_operand.vmem [shape: f32[32,128], index: 1, kind: input, shape index: {}]
  %s2 = inlined_call_operand.vmem [shape: f32[1,128], index: 2, kind: input, shape index: {}]
  %s3 = inlined_call_operand.vmem [shape: f32[128,32], index: 3, kind: input, shape index: {}]
  %s4 = inlined_call_operand.vmem [shape: f32[1,32], index: 4, kind: input, shape index: {}]
  %s5 = inlined_call_operand.hbm [shape: f32[16,32], index: 5, kind: output, shape index: {}]
  %s6 = sld [smem:[#allocation0]]
  $region61: #{_mlp_pallas.1} parent=0
    _
  %s8 = ssub.s32 1, %s6
  %s9 = scalar_select 0, %s8, %s6
  $region1: #{_mlp_pallas.1} parent=0
    #allocation3 [shape = 'u8[4096]{0}', space=vmem, size = 0x1000, scoped, tag = 'output window, operand 0, single buffered']
    #allocation4 [shape = 's32[2]{0}', space=sflag, size = 0x8, scoped, tag = 'scoped memory for _mlp_pallas.1']
    %10 = vsyncpa [#allocation4], 0
    loop: start=0, step=1, limit=4
    $region2: #{_mlp_pallas.1} parent=1 // loop_pre_header
      _
    $region3: #{_mlp_pallas.1} parent=1 // loop_header
      %s12 = sphi 0, %s16
      %p13 = scmp.ge.s32.totalorder %s12, 4
      %s19 = sphi 0, %s31
      %s20 = sphi 0, %s27
      %s21 = sphi 0, %s19
      %s22 = sphi 0, %s20
      %s23 = sphi 0, %s21
      %s24 = sphi 0, %s22
      %s34 = sphi 0, %s36
      %s37 = sphi 0, %s34
      %s38 = sphi 0, %s37
      %s54 = sphi 0, %s38
      %s60 = sphi 0, %s62
      %s63 = sphi 0, %s60
      %s64 = sphi 0, %s63
      %s80 = sphi 0, %s64
      %s86 = sphi 0, %s88
      %s89 = sphi 0, %s86
      %s90 = sphi 0, %s89
      %s106 = sphi 0, %s90
      %s112 = sphi 0, %s114
      %s115 = sphi 0, %s112
      %s116 = sphi 0, %s115
      %s132 = sphi 0, %s116
      %s136 = sphi 0, %s136
      %s138 = sphi 0, %s136
      %s139 = sphi 0, %s138
      %s153 = sphi 0, %s139
      %s159 = sphi 0, %s161
      %s162 = sphi 0, %s159
      %s163 = sphi 0, %s162
      %s179 = sphi 0, %s163
    $region4: #{_mlp_pallas.1} parent=1 // loop_header_branch
      %15 = sbr.rel (%p13) target = $region8
    $region5: #{_mlp_pallas.1} parent=1 // loop_body
      %s17 = ssub.s32 %s12, 1
      %s18 = ssub.s32 %s12, 2
      %s25 = sadd.s32 1, %s20
      %p26 = scmp.ge.s32.totalorder %s25, 1
      %s27 = scalar_select %p26, 0, %s25
      %s28 = sadd.s32 1, %s19
      %s29 = scalar_select %p26, %s28, %s19
      %p30 = scmp.ge.s32.totalorder %s29, 2
      %s31 = scalar_select %p30, 0, %s29
      %s32 = ssub.s32 %s19, %s31
      %p33 = scmp.eq.s32.totalorder %s32, 0
      %s35 = sadd.s32 %s34, 1
      %s36 = scalar_select %p33, %s34, %s35
      %p39 = pneg %p33
      %p40 = scmp.eq.s32.totalorder %s12, 1
      %p41 = por %p39, %p40
      %p42 = scmp.ne.s32.totalorder %s34, %s37
      %p43 = scmp.eq.s32.totalorder %s12, 0
      %p44 = por %p42, %p43
      %p45 = scmp.ne.s32.totalorder %s34, %s37
      %p46 = scmp.eq.s32.totalorder %s17, 1
      %p47 = por %p45, %p46
      %p48 = scmp.ne.s32.totalorder %s37, %s38
      %p49 = scmp.eq.s32.totalorder %s17, 0
      %p50 = por %p48, %p49
      %p51 = scmp.ne.s32.totalorder %s37, %s38
      %p52 = scmp.eq.s32.totalorder %s18, 1
      %p53 = por %p51, %p52
      %p55 = scmp.ne.s32.totalorder %s38, %s54
      %p56 = scmp.eq.s32.totalorder %s18, 0
      %p57 = por %p55, %p56
      %s58 = ssub.s32 %s20, %s27
      %p59 = scmp.eq.s32.totalorder %s58, 0
      %s61 = sadd.s32 %s60, 1
      %s62 = scalar_select %p59, %s60, %s61
      %p65 = pneg %p59
      %p66 = scmp.eq.s32.totalorder %s12, 1
      %p67 = por %p65, %p66
      %p68 = scmp.ne.s32.totalorder %s60, %s63
      %p69 = scmp.eq.s32.totalorder %s12, 0
      %p70 = por %p68, %p69
      %p71 = scmp.ne.s32.totalorder %s60, %s63
      %p72 = scmp.eq.s32.totalorder %s17, 1
      %p73 = por %p71, %p72
      %p74 = scmp.ne.s32.totalorder %s63, %s64
      %p75 = scmp.eq.s32.totalorder %s17, 0
      %p76 = por %p74, %p75
      %p77 = scmp.ne.s32.totalorder %s63, %s64
      %p78 = scmp.eq.s32.totalorder %s18, 1
      %p79 = por %p77, %p78
      %p81 = scmp.ne.s32.totalorder %s64, %s80
      %p82 = scmp.eq.s32.totalorder %s18, 0
      %p83 = por %p81, %p82
      %s84 = ssub.s32 %s20, %s27
      %p85 = scmp.eq.s32.totalorder %s84, 0
      %s87 = sadd.s32 %s86, 1
      %s88 = scalar_select %p85, %s86, %s87
      %p91 = pneg %p85
      %p92 = scmp.eq.s32.totalorder %s12, 1
      %p93 = por %p91, %p92
      %p94 = scmp.ne.s32.totalorder %s86, %s89
      %p95 = scmp.eq.s32.totalorder %s12, 0
      %p96 = por %p94, %p95
      %p97 = scmp.ne.s32.totalorder %s86, %s89
      %p98 = scmp.eq.s32.totalorder %s17, 1
      %p99 = por %p97, %p98
      %p100 = scmp.ne.s32.totalorder %s89, %s90
      %p101 = scmp.eq.s32.totalorder %s17, 0
      %p102 = por %p100, %p101
      %p103 = scmp.ne.s32.totalorder %s89, %s90
      %p104 = scmp.eq.s32.totalorder %s18, 1
      %p105 = por %p103, %p104
      %p107 = scmp.ne.s32.totalorder %s90, %s106
      %p108 = scmp.eq.s32.totalorder %s18, 0
      %p109 = por %p107, %p108
      %s110 = ssub.s32 %s20, %s27
      %p111 = scmp.eq.s32.totalorder %s110, 0
      %s113 = sadd.s32 %s112, 1
      %s114 = scalar_select %p111, %s112, %s113
      %p117 = pneg %p111
      %p118 = scmp.eq.s32.totalorder %s12, 1
      %p119 = por %p117, %p118
      %p120 = scmp.ne.s32.totalorder %s112, %s115
      %p121 = scmp.eq.s32.totalorder %s12, 0
      %p122 = por %p120, %p121
      %p123 = scmp.ne.s32.totalorder %s112, %s115
      %p124 = scmp.eq.s32.totalorder %s17, 1
      %p125 = por %p123, %p124
      %p126 = scmp.ne.s32.totalorder %s115, %s116
      %p127 = scmp.eq.s32.totalorder %s17, 0
      %p128 = por %p126, %p127
      %p129 = scmp.ne.s32.totalorder %s115, %s116
      %p130 = scmp.eq.s32.totalorder %s18, 1
      %p131 = por %p129, %p130
      %p133 = scmp.ne.s32.totalorder %s116, %s132
      %p134 = scmp.eq.s32.totalorder %s18, 0
      %p135 = por %p133, %p134
      %s137 = sadd.s32 %s136, 1
      %p140 = scmp.eq.s32.totalorder %s12, 1
      %p141 = scmp.ne.s32.totalorder %s136, %s138
      %p142 = scmp.eq.s32.totalorder %s12, 0
      %p143 = por %p141, %p142
      %p144 = scmp.ne.s32.totalorder %s136, %s138
      %p145 = scmp.eq.s32.totalorder %s17, 1
      %p146 = por %p144, %p145
      %p147 = scmp.ne.s32.totalorder %s138, %s139
      %p148 = scmp.eq.s32.totalorder %s17, 0
      %p149 = por %p147, %p148
      %p150 = scmp.ne.s32.totalorder %s138, %s139
      %p151 = scmp.eq.s32.totalorder %s18, 1
      %p152 = por %p150, %p151
      %p154 = scmp.ne.s32.totalorder %s139, %s153
      %p155 = scmp.eq.s32.totalorder %s18, 0
      %p156 = por %p154, %p155
      %s157 = ssub.s32 %s19, %s31
      %p158 = scmp.eq.s32.totalorder %s157, 0
      %s160 = sadd.s32 %s159, 1
      %s161 = scalar_select %p158, %s159, %s160
      %p164 = pneg %p158
      %p165 = scmp.eq.s32.totalorder %s12, 1
      %p166 = por %p164, %p165
      %p167 = scmp.ne.s32.totalorder %s159, %s162
      %p168 = scmp.eq.s32.totalorder %s12, 0
      %p169 = por %p167, %p168
      %p170 = scmp.ne.s32.totalorder %s159, %s162
      %p171 = scmp.eq.s32.totalorder %s17, 1
      %p172 = por %p170, %p171
      %p173 = scmp.ne.s32.totalorder %s162, %s163
      %p174 = scmp.eq.s32.totalorder %s17, 0
      %p175 = por %p173, %p174
      %p176 = scmp.ne.s32.totalorder %s162, %s163
      %p177 = scmp.eq.s32.totalorder %s18, 1
      %p178 = por %p176, %p177
      %p180 = scmp.ne.s32.totalorder %s163, %s179
      %p181 = scmp.eq.s32.totalorder %s18, 0
      %p182 = por %p180, %p181
      %p183 = scmp.le.s32.totalorder 1, %s12
      %p184 = scmp.lt.s32.totalorder %s12, 3
      %p185 = pnand %p183, %p184
      %p186 = pneg %p185
      // Predicated region
      $region9: #{_mlp_pallas.1} parent=5 // pred_check
        _
      $region10: #{_mlp_pallas.1} parent=5 // pred_check_branch
        %188 = sbr.rel (%p185) target = $region12
      $region11: #{_mlp_pallas.1} parent=5 // pred_region
        %s189 = ssub.s32 %s12, 1
        // Predicated region
        $region13: #{_mlp_pallas.1} parent=11 // pred_check
          %p190 = pneg %p50
        $region14: #{_mlp_pallas.1} parent=11 // pred_check_branch
          %192 = sbr.rel (%p190) target = $region16
        $region15: #{_mlp_pallas.1} parent=11 // pred_region
          %p193 = scmp.lt.s32.totalorder %s21, 1
          %s194 = scalar_select %p193, %s21, 1
          %s195 = smul.addr %s194, 8
          %s196 = scalar_lea.vmem %s0, %s195
        $region16: #{_mlp_pallas.1} parent=11 // pred_fallthru
          _
        // Predicated region
        $region17: #{_mlp_pallas.1} parent=11 // pred_check
          %p197 = pneg %p76
        $region18: #{_mlp_pallas.1} parent=11 // pred_check_branch
          %199 = sbr.rel (%p197) target = $region20
        $region19: #{_mlp_pallas.1} parent=11 // pred_region
          %p200 = scmp.lt.s32.totalorder %s22, 0
          %s201 = scalar_select %p200, %s22, 0
          %s202 = smul.addr %s201, 8
          %s203 = scalar_lea.vmem %s1, %s202
        $region20: #{_mlp_pallas.1} parent=11 // pred_fallthru
          _
        // Predicated region
        $region21: #{_mlp_pallas.1} parent=11 // pred_check
          %p204 = pneg %p102
        $region22: #{_mlp_pallas.1} parent=11 // pred_check_branch
          %206 = sbr.rel (%p204) target = $region24
        $region23: #{_mlp_pallas.1} parent=11 // pred_region
          %p207 = scmp.lt.s32.totalorder %s22, 0
          %s208 = scalar_select %p207, %s22, 0
          %s209 = scalar_lea.vmem %s2, %s208
        $region24: #{_mlp_pallas.1} parent=11 // pred_fallthru
          _
        // Predicated region
        $region25: #{_mlp_pallas.1} parent=11 // pred_check
          %p210 = pneg %p128
        $region26: #{_mlp_pallas.1} parent=11 // pred_check_branch
          %212 = sbr.rel (%p210) target = $region28
        $region27: #{_mlp_pallas.1} parent=11 // pred_region
          %s213 = smul.u32 16, %s22
          %p214 = scmp.lt.s32.totalorder %s213, 15
          %s215 = scalar_select %p214, %s213, 15
          %s216 = smul.addr %s215, 8
          %s217 = scalar_lea.vmem %s3, %s216
          %s218 = smul.u32 16, %s22
        $region28: #{_mlp_pallas.1} parent=11 // pred_fallthru
          _
        // Predicated region
        $region29: #{_mlp_pallas.1} parent=11 // pred_check
          %p219 = pneg %p149
        $region30: #{_mlp_pallas.1} parent=11 // pred_check_branch
          %221 = sbr.rel (%p219) target = $region32
        $region31: #{_mlp_pallas.1} parent=11 // pred_region
          _
        $region32: #{_mlp_pallas.1} parent=11 // pred_fallthru
          _
      $region12: #{_mlp_pallas.1} parent=5 // pred_fallthru
        _
      %p222 = scmp.lt.s32.totalorder %s12, 2
      // Predicated region
      $region33: #{_mlp_pallas.1} parent=5 // pred_check
        %p223 = pneg %p222
      $region34: #{_mlp_pallas.1} parent=5 // pred_check_branch
        %225 = sbr.rel (%p223) target = $region36
      $region35: #{_mlp_pallas.1} parent=5 // pred_region
        _
      $region36: #{_mlp_pallas.1} parent=5 // pred_fallthru
        _
      %p226 = scmp.le.s32.totalorder 1, %s12
      %p227 = scmp.lt.s32.totalorder %s12, 3
      %p228 = pnand %p226, %p227
      %p229 = pneg %p228
      // Predicated region
      $region37: #{_mlp_pallas.1} parent=5 // pred_check
        _
      $region38: #{_mlp_pallas.1} parent=5 // pred_check_branch
        %231 = sbr.rel (%p228) target = $region40
      $region39: #{_mlp_pallas.1} parent=5 // pred_region
        %s232 = ssub.s32 %s12, 1
        %p233 = scmp.lt.s32.totalorder %s21, 1
        %s234 = scalar_select %p233, %s21, 1
        %s235 = smul.addr %s234, 8
        %s236 = scalar_lea.vmem %s0, %s235
        %p237 = pneg %p50
        %p238 = pneg %p47
        %p239 = scmp.lt.s32.totalorder %s22, 0
        %s240 = scalar_select %p239, %s22, 0
        %s241 = smul.addr %s240, 8
        %s242 = scalar_lea.vmem %s1, %s241
        %p243 = pneg %p76
        %p244 = pneg %p73
        %p245 = scmp.lt.s32.totalorder %s22, 0
        %s246 = scalar_select %p245, %s22, 0
        %s247 = scalar_lea.vmem %s2, %s246
        %p248 = pneg %p102
        %p249 = pneg %p99
        %s250 = smul.u32 16, %s22
        %p251 = scmp.lt.s32.totalorder %s250, 15
        %s252 = scalar_select %p251, %s250, 15
        %s253 = smul.addr %s252, 8
        %s254 = scalar_lea.vmem %s3, %s253
        %p255 = pneg %p128
        %p256 = pneg %p125
        %p257 = pneg %p149
        %p258 = pneg %p146
        %p259 = pneg %p175
        %p260 = pneg %p172
        %p261 = scmp.lt.s32.totalorder %s21, 1
        %s262 = scalar_select %p261, %s21, 1
        %s263 = smul.addr %s262, 8
        %s264 = scalar_lea.vmem %s0, %s263
        %p265 = scmp.lt.s32.totalorder %s22, 0
        %s266 = scalar_select %p265, %s22, 0
        %s267 = smul.addr %s266, 8
        %s268 = scalar_lea.vmem %s1, %s267
        %p269 = scmp.lt.s32.totalorder %s22, 0
        %s270 = scalar_select %p269, %s22, 0
        %s271 = scalar_lea.vmem %s2, %s270
        %s272 = smul.u32 16, %s22
        %p273 = scmp.lt.s32.totalorder %s272, 15
        %s274 = scalar_select %p273, %s272, 15
        %s275 = smul.addr %s274, 8
        %s276 = scalar_lea.vmem %s3, %s275
        %s277 = smul.u32 16, %s22
        %p278 = scmp.eq.s32.totalorder %s22, 0
        // Predicated region
        $region41: #{_mlp_pallas.1} parent=39 // pred_check
          %p279 = pneg %p278
        $region42: #{_mlp_pallas.1} parent=39 // pred_check_branch
          %281 = sbr.rel (%p279) target = $region44
        $region43: #{_mlp_pallas.1} parent=39 // pred_region
          %vm282 = vcmask 261120
          %283 = vst.msk [vmem:[#allocation2] sm:$0xff] %vm282, 0.0
        $region44: #{_mlp_pallas.1} parent=39 // pred_fallthru
          _
        %v284 = vld [vmem:[%s264] sm:$0xff]
        %v285 = vld [vmem:[%s268] sm:$0xff]
        %v286 = vld [vmem:[%s268 + $0x8] sm:$0xff]
        %v287 = vld [vmem:[%s268 + $0x10] sm:$0xff]
        %v288 = vld [vmem:[%s268 + $0x18] sm:$0xff]
        %v289 = vld [vmem:[%s271] sm:$0x1]
        %v291 = vperm.slane %v289, 0
        %vm293 = vcmask 261120
        %v295 = vsel %vm293, %v284, 0
        %297 = vmatpush.msra.mxu0 0.0
        %298 = vmatpush.msra.mxu0 0.0
        %299 = vmatpush.msra.mxu0 0.0
        %300 = vmatpush.msra.mxu0 0.0
        %301 = vmatpush.msra.mxu0 0.0
        %302 = vmatpush.msra.mxu0 0.0
        %303 = vmatpush.msra.mxu0 0.0
        %304 = vmatpush.msra.mxu0 0.0
        %305 = vmatpush.msra.mxu0 0.0
        %306 = vmatpush.msra.mxu0 0.0
        %307 = vmatpush.msra.mxu0 0.0
        %308 = vmatpush.msra.mxu0 0.0
        %309 = vmatpush.msra.mxu0 %v288
        %310 = vmatpush.msra.mxu0 %v287
        %311 = vmatpush.msra.mxu0 %v286
        %312 = vmatpush.msra.mxu0 %v285
        %313 = vmatmul.f32.gmra.mxu0 %v295
        %v314 = vpop.f32.mrf.mxu0
        %v315 = vadd.f32 %v291, %v314
        %316 = vdwg.mxu0
        %v317 = vmul.f32 %v315, 0.5
        %v318 = vmul.f32 %v315, 0.044715
        %v319 = vmul.f32 %v318, %v315
        %v320 = vmul.f32 %v319, %v315
        %v321 = vadd.f32 %v315, %v320
        %v322 = vmul.f32 %v321, 0.7978846
        %v323 = vtanh.pop %v322
        %v324 = vadd.f32 %v323, 1.0
        %v325 = vmul.f32 %v317, %v324
        %v326 = vld [vmem:[#allocation2] sm:$0xff]
        %v327 = vld [vmem:[%s276] sm:$0xff]
        %v328 = vld [vmem:[%s276 + $0x8] sm:$0xff]
        %v329 = vld [vmem:[%s276 + $0x10] sm:$0xff]
        %v330 = vld [vmem:[%s276 + $0x18] sm:$0xff]
        %v331 = vld [vmem:[%s276 + $0x20] sm:$0xff]
        %v332 = vld [vmem:[%s276 + $0x28] sm:$0xff]
        %v333 = vld [vmem:[%s276 + $0x30] sm:$0xff]
        %v334 = vld [vmem:[%s276 + $0x38] sm:$0xff]
        %v335 = vld [vmem:[%s276 + $0x40] sm:$0xff]
        %v336 = vld [vmem:[%s276 + $0x48] sm:$0xff]
        %v337 = vld [vmem:[%s276 + $0x50] sm:$0xff]
        %v338 = vld [vmem:[%s276 + $0x58] sm:$0xff]
        %v339 = vld [vmem:[%s276 + $0x60] sm:$0xff]
        %v340 = vld [vmem:[%s276 + $0x68] sm:$0xff]
        %v341 = vld [vmem:[%s276 + $0x70] sm:$0xff]
        %v342 = vld [vmem:[%s276 + $0x78] sm:$0xff]
        %343 = vmatpush.msra.mxu0 %v342
        %344 = vmatpush.msra.mxu0 %v341
        %345 = vmatpush.msra.mxu0 %v340
        %346 = vmatpush.msra.mxu0 %v339
        %347 = vmatpush.msra.mxu0 %v338
        %348 = vmatpush.msra.mxu0 %v337
        %349 = vmatpush.msra.mxu0 %v336
        %350 = vmatpush.msra.mxu0 %v335
        %351 = vmatpush.msra.mxu0 %v334
        %352 = vmatpush.msra.mxu0 %v333
        %353 = vmatpush.msra.mxu0 %v332
        %354 = vmatpush.msra.mxu0 %v331
        %355 = vmatpush.msra.mxu0 %v330
        %356 = vmatpush.msra.mxu0 %v329
        %357 = vmatpush.msra.mxu0 %v328
        %358 = vmatpush.msra.mxu0 %v327
        %359 = vmatmul.f32.gmra.mxu0 %v325
        %v360 = vpop.f32.mrf.mxu0
        %v361 = vadd.f32 0.0, %v360
        %362 = vdwg.mxu0
        %v363 = vadd.f32 %v326, %v361
        %364 = vst.msk [vmem:[#allocation2] sm:$0xff] %vm293, %v363
        // Predicated region
        $region45: #{_mlp_pallas.1} parent=39 // pred_check
          %p365 = pneg %p278
        $region46: #{_mlp_pallas.1} parent=39 // pred_check_branch
          %367 = sbr.rel (%p365) target = $region48
        $region47: #{_mlp_pallas.1} parent=39 // pred_region
          %v368 = vld [vmem:[#allocation2] sm:$0xff]
          %v369 = vld [vmem:[%s4] sm:$0x1]
          %v371 = vperm.slane %v369, 0
          %v373 = vadd.f32 %v368, %v371
          %374 = vst.msk [vmem:[#allocation3] sm:$0xff] %vm293, %v373
        $region48: #{_mlp_pallas.1} parent=39 // pred_fallthru
          _
        // Predicated region
        $region49: #{_mlp_pallas.1} parent=39 // pred_check
          %p375 = pneg %p172
        $region50: #{_mlp_pallas.1} parent=39 // pred_check_branch
          %377 = sbr.rel (%p375) target = $region52
        $region51: #{_mlp_pallas.1} parent=39 // pred_region
          %379 = vsyncadd [#allocation4], 0
          %s380 = smul.addr %s21, 8
          %s381 = scalar_lea.hbm %s5, %s380
          %s383 = sshll.u32 [#allocation3], 4
          %s384 = int_to_ptr.vmem [resolvable:$true] %s383
          %s385 = sshll.u32 %s381, 4
          %s386 = int_to_ptr.hbm [resolvable:$true] %s385
          %388 = dma.vmem_to_hbm [thread:$0]  %s384, 128, %s386, [#allocation4]
        $region52: #{_mlp_pallas.1} parent=39 // pred_fallthru
          _
        // Predicated region
        $region53: #{_mlp_pallas.1} parent=39 // pred_check
          %p389 = pneg %p172
        $region54: #{_mlp_pallas.1} parent=39 // pred_check_branch
          %391 = sbr.rel (%p389) target = $region56
        $region55: #{_mlp_pallas.1} parent=39 // pred_region
          %393 = dma.done [#allocation4], 128
        $region56: #{_mlp_pallas.1} parent=39 // pred_fallthru
          _
      $region40: #{_mlp_pallas.1} parent=5 // pred_fallthru
        _
      %p394 = scmp.le.s32.totalorder 2, %s12
      // Predicated region
      $region57: #{_mlp_pallas.1} parent=5 // pred_check
        %p395 = pneg %p394
      $region58: #{_mlp_pallas.1} parent=5 // pred_check_branch
        %397 = sbr.rel (%p395) target = $region60
      $region59: #{_mlp_pallas.1} parent=5 // pred_region
        %s398 = ssub.s32 %s12, 2
      $region60: #{_mlp_pallas.1} parent=5 // pred_fallthru
        _
    $region6: #{_mlp_pallas.1} parent=1 // loop_footer
      %s16 = sadd.s32 1, %s12
    $region7: #{_mlp_pallas.1} parent=1 // loop_footer_branch
      %11 = sbr.rel target = $region3
    $region8: #{_mlp_pallas.1} parent=1 // loop_exit
      _
    %399 = vsyncpa [#allocation4], 1
    %s400 = scalar_lea.sflag [#allocation4], 1
    %401 = vsyncpa %s400, 1

// kernel: _mlp_pallas.1
$region0: #{_mlp_pallas.1}
  #allocation0 [shape = 'u32[]', space=smem, size = 0x4, offset = 0x4, fixed_abs, tag = 'smem constant byte address 0x4 - core index']
  #allocation1 [shape = 'u32[72,128]{1,0:T(1,128)}', space=vmem, size = 0x9000, scoped, tag = 'internal scratch']
  #allocation2 [shape = 'f32[8,32]{1,0:T(8,128)}', space=vmem, size = 0x1000, scoped, tag = 'scratch operand']
  %s0 = inlined_call_operand.vmem [shape: f32[16,32], index: 0, kind: input, shape index: {}]
  %s1 = inlined_call_operand.vmem [shape: f32[32,128], index: 1, kind: input, shape index: {}]
  %s2 = inlined_call_operand.vmem [shape: f32[1,128], index: 2, kind: input, shape index: {}]
  %s3 = inlined_call_operand.vmem [shape: f32[128,32], index: 3, kind: input, shape index: {}]
  %s4 = inlined_call_operand.vmem [shape: f32[1,32], index: 4, kind: input, shape index: {}]
  %s5 = inlined_call_operand.hbm [shape: f32[16,32], index: 5, kind: output, shape index: {}]
  %s6 = sld [smem:[#allocation0]]
  $region61: #{_mlp_pallas.1} parent=0
    _
  %s8 = ssub.s32 1, %s6
  %s9 = scalar_select 0, %s8, %s6
  $region1: #{_mlp_pallas.1} parent=0
    #allocation3 [shape = 'u8[8192]{0}', space=vmem, size = 0x2000, scoped, tag = 'output window, operand 0']
    #allocation4 [shape = 's32[2]{0}', space=sflag, size = 0x8, scoped, tag = 'scoped memory for _mlp_pallas.1']
    %10 = vsyncpa [#allocation4], 0
    %s11 = scalar_lea.sflag [#allocation4], 1
    %12 = vsyncpa %s11, 0
    loop: start=0, step=1, limit=4
    $region2: #{_mlp_pallas.1} parent=1 // loop_pre_header
      _
    $region3: #{_mlp_pallas.1} parent=1 // loop_header
      %s14 = sphi 0, %s18
      %p15 = scmp.ge.s32.totalorder %s14, 4
      %s21 = sphi 0, %s33
      %s22 = sphi 0, %s29
      %s23 = sphi 0, %s21
      %s24 = sphi 0, %s22
      %s25 = sphi 0, %s23
      %s26 = sphi 0, %s24
      %s36 = sphi 0, %s38
      %s39 = sphi 0, %s36
      %s40 = sphi 0, %s39
      %s56 = sphi 0, %s40
      %s62 = sphi 0, %s64
      %s65 = sphi 0, %s62
      %s66 = sphi 0, %s65
      %s82 = sphi 0, %s66
      %s88 = sphi 0, %s90
      %s91 = sphi 0, %s88
      %s92 = sphi 0, %s91
      %s108 = sphi 0, %s92
      %s114 = sphi 0, %s116
      %s117 = sphi 0, %s114
      %s118 = sphi 0, %s117
      %s134 = sphi 0, %s118
      %s138 = sphi 0, %s138
      %s140 = sphi 0, %s138
      %s141 = sphi 0, %s140
      %s155 = sphi 0, %s141
      %s161 = sphi 0, %s163
      %s164 = sphi 0, %s161
      %s165 = sphi 0, %s164
      %s181 = sphi 0, %s165
    $region4: #{_mlp_pallas.1} parent=1 // loop_header_branch
      %17 = sbr.rel (%p15) target = $region8
    $region5: #{_mlp_pallas.1} parent=1 // loop_body
      %s19 = ssub.s32 %s14, 1
      %s20 = ssub.s32 %s14, 2
      %s27 = sadd.s32 1, %s22
      %p28 = scmp.ge.s32.totalorder %s27, 1
      %s29 = scalar_select %p28, 0, %s27
      %s30 = sadd.s32 1, %s21
      %s31 = scalar_select %p28, %s30, %s21
      %p32 = scmp.ge.s32.totalorder %s31, 2
      %s33 = scalar_select %p32, 0, %s31
      %s34 = ssub.s32 %s21, %s33
      %p35 = scmp.eq.s32.totalorder %s34, 0
      %s37 = sadd.s32 %s36, 1
      %s38 = scalar_select %p35, %s36, %s37
      %p41 = pneg %p35
      %p42 = scmp.eq.s32.totalorder %s14, 1
      %p43 = por %p41, %p42
      %p44 = scmp.ne.s32.totalorder %s36, %s39
      %p45 = scmp.eq.s32.totalorder %s14, 0
      %p46 = por %p44, %p45
      %p47 = scmp.ne.s32.totalorder %s36, %s39
      %p48 = scmp.eq.s32.totalorder %s19, 1
      %p49 = por %p47, %p48
      %p50 = scmp.ne.s32.totalorder %s39, %s40
      %p51 = scmp.eq.s32.totalorder %s19, 0
      %p52 = por %p50, %p51
      %p53 = scmp.ne.s32.totalorder %s39, %s40
      %p54 = scmp.eq.s32.totalorder %s20, 1
      %p55 = por %p53, %p54
      %p57 = scmp.ne.s32.totalorder %s40, %s56
      %p58 = scmp.eq.s32.totalorder %s20, 0
      %p59 = por %p57, %p58
      %s60 = ssub.s32 %s22, %s29
      %p61 = scmp.eq.s32.totalorder %s60, 0
      %s63 = sadd.s32 %s62, 1
      %s64 = scalar_select %p61, %s62, %s63
      %p67 = pneg %p61
      %p68 = scmp.eq.s32.totalorder %s14, 1
      %p69 = por %p67, %p68
      %p70 = scmp.ne.s32.totalorder %s62, %s65
      %p71 = scmp.eq.s32.totalorder %s14, 0
      %p72 = por %p70, %p71
      %p73 = scmp.ne.s32.totalorder %s62, %s65
      %p74 = scmp.eq.s32.totalorder %s19, 1
      %p75 = por %p73, %p74
      %p76 = scmp.ne.s32.totalorder %s65, %s66
      %p77 = scmp.eq.s32.totalorder %s19, 0
      %p78 = por %p76, %p77
      %p79 = scmp.ne.s32.totalorder %s65, %s66
      %p80 = scmp.eq.s32.totalorder %s20, 1
      %p81 = por %p79, %p80
      %p83 = scmp.ne.s32.totalorder %s66, %s82
      %p84 = scmp.eq.s32.totalorder %s20, 0
      %p85 = por %p83, %p84
      %s86 = ssub.s32 %s22, %s29
      %p87 = scmp.eq.s32.totalorder %s86, 0
      %s89 = sadd.s32 %s88, 1
      %s90 = scalar_select %p87, %s88, %s89
      %p93 = pneg %p87
      %p94 = scmp.eq.s32.totalorder %s14, 1
      %p95 = por %p93, %p94
      %p96 = scmp.ne.s32.totalorder %s88, %s91
      %p97 = scmp.eq.s32.totalorder %s14, 0
      %p98 = por %p96, %p97
      %p99 = scmp.ne.s32.totalorder %s88, %s91
      %p100 = scmp.eq.s32.totalorder %s19, 1
      %p101 = por %p99, %p100
      %p102 = scmp.ne.s32.totalorder %s91, %s92
      %p103 = scmp.eq.s32.totalorder %s19, 0
      %p104 = por %p102, %p103
      %p105 = scmp.ne.s32.totalorder %s91, %s92
      %p106 = scmp.eq.s32.totalorder %s20, 1
      %p107 = por %p105, %p106
      %p109 = scmp.ne.s32.totalorder %s92, %s108
      %p110 = scmp.eq.s32.totalorder %s20, 0
      %p111 = por %p109, %p110
      %s112 = ssub.s32 %s22, %s29
      %p113 = scmp.eq.s32.totalorder %s112, 0
      %s115 = sadd.s32 %s114, 1
      %s116 = scalar_select %p113, %s114, %s115
      %p119 = pneg %p113
      %p120 = scmp.eq.s32.totalorder %s14, 1
      %p121 = por %p119, %p120
      %p122 = scmp.ne.s32.totalorder %s114, %s117
      %p123 = scmp.eq.s32.totalorder %s14, 0
      %p124 = por %p122, %p123
      %p125 = scmp.ne.s32.totalorder %s114, %s117
      %p126 = scmp.eq.s32.totalorder %s19, 1
      %p127 = por %p125, %p126
      %p128 = scmp.ne.s32.totalorder %s117, %s118
      %p129 = scmp.eq.s32.totalorder %s19, 0
      %p130 = por %p128, %p129
      %p131 = scmp.ne.s32.totalorder %s117, %s118
      %p132 = scmp.eq.s32.totalorder %s20, 1
      %p133 = por %p131, %p132
      %p135 = scmp.ne.s32.totalorder %s118, %s134
      %p136 = scmp.eq.s32.totalorder %s20, 0
      %p137 = por %p135, %p136
      %s139 = sadd.s32 %s138, 1
      %p142 = scmp.eq.s32.totalorder %s14, 1
      %p143 = scmp.ne.s32.totalorder %s138, %s140
      %p144 = scmp.eq.s32.totalorder %s14, 0
      %p145 = por %p143, %p144
      %p146 = scmp.ne.s32.totalorder %s138, %s140
      %p147 = scmp.eq.s32.totalorder %s19, 1
      %p148 = por %p146, %p147
      %p149 = scmp.ne.s32.totalorder %s140, %s141
      %p150 = scmp.eq.s32.totalorder %s19, 0
      %p151 = por %p149, %p150
      %p152 = scmp.ne.s32.totalorder %s140, %s141
      %p153 = scmp.eq.s32.totalorder %s20, 1
      %p154 = por %p152, %p153
      %p156 = scmp.ne.s32.totalorder %s141, %s155
      %p157 = scmp.eq.s32.totalorder %s20, 0
      %p158 = por %p156, %p157
      %s159 = ssub.s32 %s21, %s33
      %p160 = scmp.eq.s32.totalorder %s159, 0
      %s162 = sadd.s32 %s161, 1
      %s163 = scalar_select %p160, %s161, %s162
      %p166 = pneg %p160
      %p167 = scmp.eq.s32.totalorder %s14, 1
      %p168 = por %p166, %p167
      %p169 = scmp.ne.s32.totalorder %s161, %s164
      %p170 = scmp.eq.s32.totalorder %s14, 0
      %p171 = por %p169, %p170
      %p172 = scmp.ne.s32.totalorder %s161, %s164
      %p173 = scmp.eq.s32.totalorder %s19, 1
      %p174 = por %p172, %p173
      %p175 = scmp.ne.s32.totalorder %s164, %s165
      %p176 = scmp.eq.s32.totalorder %s19, 0
      %p177 = por %p175, %p176
      %p178 = scmp.ne.s32.totalorder %s164, %s165
      %p179 = scmp.eq.s32.totalorder %s20, 1
      %p180 = por %p178, %p179
      %p182 = scmp.ne.s32.totalorder %s165, %s181
      %p183 = scmp.eq.s32.totalorder %s20, 0
      %p184 = por %p182, %p183
      %p185 = scmp.le.s32.totalorder 1, %s14
      %p186 = scmp.lt.s32.totalorder %s14, 3
      %p187 = pnand %p185, %p186
      %p188 = pneg %p187
      // Predicated region
      $region9: #{_mlp_pallas.1} parent=5 // pred_check
        _
      $region10: #{_mlp_pallas.1} parent=5 // pred_check_branch
        %190 = sbr.rel (%p187) target = $region12
      $region11: #{_mlp_pallas.1} parent=5 // pred_region
        %s191 = ssub.s32 %s14, 1
        // Predicated region
        $region13: #{_mlp_pallas.1} parent=11 // pred_check
          %p192 = pneg %p78
        $region14: #{_mlp_pallas.1} parent=11 // pred_check_branch
          %194 = sbr.rel (%p192) target = $region16
        $region15: #{_mlp_pallas.1} parent=11 // pred_region
          %p195 = scmp.lt.s32.totalorder %s24, 0
          %s196 = scalar_select %p195, %s24, 0
          %s197 = smul.addr %s196, 8
          %s198 = scalar_lea.vmem %s1, %s197
        $region16: #{_mlp_pallas.1} parent=11 // pred_fallthru
          _
        // Predicated region
        $region17: #{_mlp_pallas.1} parent=11 // pred_check
          %p199 = pneg %p104
        $region18: #{_mlp_pallas.1} parent=11 // pred_check_branch
          %201 = sbr.rel (%p199) target = $region20
        $region19: #{_mlp_pallas.1} parent=11 // pred_region
          %p202 = scmp.lt.s32.totalorder %s24, 0
          %s203 = scalar_select %p202, %s24, 0
          %s204 = scalar_lea.vmem %s2, %s203
        $region20: #{_mlp_pallas.1} parent=11 // pred_fallthru
          _
        // Predicated region
        $region21: #{_mlp_pallas.1} parent=11 // pred_check
          %p205 = pneg %p130
        $region22: #{_mlp_pallas.1} parent=11 // pred_check_branch
          %207 = sbr.rel (%p205) target = $region24
        $region23: #{_mlp_pallas.1} parent=11 // pred_region
          %s208 = smul.u32 16, %s24
          %p209 = scmp.lt.s32.totalorder %s208, 15
          %s210 = scalar_select %p209, %s208, 15
          %s211 = smul.addr %s210, 8
          %s212 = scalar_lea.vmem %s3, %s211
          %s213 = smul.u32 16, %s24
        $region24: #{_mlp_pallas.1} parent=11 // pred_fallthru
          _
        // Predicated region
        $region25: #{_mlp_pallas.1} parent=11 // pred_check
          %p214 = pneg %p151
        $region26: #{_mlp_pallas.1} parent=11 // pred_check_branch
          %216 = sbr.rel (%p214) target = $region28
        $region27: #{_mlp_pallas.1} parent=11 // pred_region
          _
        $region28: #{_mlp_pallas.1} parent=11 // pred_fallthru
          _
      $region12: #{_mlp_pallas.1} parent=5 // pred_fallthru
        _
      %p217 = scmp.lt.s32.totalorder %s14, 2
      // Predicated region
      $region29: #{_mlp_pallas.1} parent=5 // pred_check
        %p218 = pneg %p217
      $region30: #{_mlp_pallas.1} parent=5 // pred_check_branch
        %220 = sbr.rel (%p218) target = $region32
      $region31: #{_mlp_pallas.1} parent=5 // pred_region
        // Predicated region
        $region33: #{_mlp_pallas.1} parent=31 // pred_check
          %p221 = pneg %p46
        $region34: #{_mlp_pallas.1} parent=31 // pred_check_branch
          %223 = sbr.rel (%p221) target = $region36
        $region35: #{_mlp_pallas.1} parent=31 // pred_region
          %p224 = scmp.lt.s32.totalorder %s21, 1
          %s225 = scalar_select %p224, %s21, 1
          %s226 = smul.addr %s225, 8
          %s227 = scalar_lea.vmem %s0, %s226
        $region36: #{_mlp_pallas.1} parent=31 // pred_fallthru
          _
      $region32: #{_mlp_pallas.1} parent=5 // pred_fallthru
        _
      %p228 = scmp.le.s32.totalorder 1, %s14
      %p229 = scmp.lt.s32.totalorder %s14, 3
      %p230 = pnand %p228, %p229
      %p231 = pneg %p230
      // Predicated region
      $region37: #{_mlp_pallas.1} parent=5 // pred_check
        _
      $region38: #{_mlp_pallas.1} parent=5 // pred_check_branch
        %233 = sbr.rel (%p230) target = $region40
      $region39: #{_mlp_pallas.1} parent=5 // pred_region
        %s234 = ssub.s32 %s14, 1
        %p235 = scmp.lt.s32.totalorder %s23, 1
        %s236 = scalar_select %p235, %s23, 1
        %s237 = smul.addr %s236, 8
        %s238 = scalar_lea.vmem %s0, %s237
        %p239 = pneg %p52
        %p240 = pneg %p49
        %p241 = scmp.lt.s32.totalorder %s24, 0
        %s242 = scalar_select %p241, %s24, 0
        %s243 = smul.addr %s242, 8
        %s244 = scalar_lea.vmem %s1, %s243
        %p245 = pneg %p78
        %p246 = pneg %p75
        %p247 = scmp.lt.s32.totalorder %s24, 0
        %s248 = scalar_select %p247, %s24, 0
        %s249 = scalar_lea.vmem %s2, %s248
        %p250 = pneg %p104
        %p251 = pneg %p101
        %s252 = smul.u32 16, %s24
        %p253 = scmp.lt.s32.totalorder %s252, 15
        %s254 = scalar_select %p253, %s252, 15
        %s255 = smul.addr %s254, 8
        %s256 = scalar_lea.vmem %s3, %s255
        %p257 = pneg %p130
        %p258 = pneg %p127
        %p259 = pneg %p151
        %p260 = pneg %p148
        %p261 = pneg %p177
        %p262 = pneg %p174
        %s263 = sand.u32 %s164, 1
        %s264 = scalar_lea.sflag [#allocation4], %s263
        %s265 = sand.u32 %s164, 1
        %s266 = smul.addr %s265, 8
        %s267 = scalar_lea.vmem [#allocation3], %s266
        %p268 = scmp.lt.s32.totalorder %s23, 1
        %s269 = scalar_select %p268, %s23, 1
        %s270 = smul.addr %s269, 8
        %s271 = scalar_lea.vmem %s0, %s270
        %p272 = scmp.lt.s32.totalorder %s24, 0
        %s273 = scalar_select %p272, %s24, 0
        %s274 = smul.addr %s273, 8
        %s275 = scalar_lea.vmem %s1, %s274
        %p276 = scmp.lt.s32.totalorder %s24, 0
        %s277 = scalar_select %p276, %s24, 0
        %s278 = scalar_lea.vmem %s2, %s277
        %s279 = smul.u32 16, %s24
        %p280 = scmp.lt.s32.totalorder %s279, 15
        %s281 = scalar_select %p280, %s279, 15
        %s282 = smul.addr %s281, 8
        %s283 = scalar_lea.vmem %s3, %s282
        %s284 = smul.u32 16, %s24
        %p285 = scmp.eq.s32.totalorder %s24, 0
        // Predicated region
        $region41: #{_mlp_pallas.1} parent=39 // pred_check
          %p286 = pneg %p285
        $region42: #{_mlp_pallas.1} parent=39 // pred_check_branch
          %288 = sbr.rel (%p286) target = $region44
        $region43: #{_mlp_pallas.1} parent=39 // pred_region
          %vm289 = vcmask 261120
          %290 = vst.msk [vmem:[#allocation2] sm:$0xff] %vm289, 0.0
        $region44: #{_mlp_pallas.1} parent=39 // pred_fallthru
          _
        %v291 = vld [vmem:[%s271] sm:$0xff]
        %v292 = vld [vmem:[%s275] sm:$0xff]
        %v293 = vld [vmem:[%s275 + $0x8] sm:$0xff]
        %v294 = vld [vmem:[%s275 + $0x10] sm:$0xff]
        %v295 = vld [vmem:[%s275 + $0x18] sm:$0xff]
        %v296 = vld [vmem:[%s278] sm:$0x1]
        %v298 = vperm.slane %v296, 0
        %vm300 = vcmask 261120
        %v302 = vsel %vm300, %v291, 0
        %304 = vmatpush.msra.mxu0 0.0
        %305 = vmatpush.msra.mxu0 0.0
        %306 = vmatpush.msra.mxu0 0.0
        %307 = vmatpush.msra.mxu0 0.0
        %308 = vmatpush.msra.mxu0 0.0
        %309 = vmatpush.msra.mxu0 0.0
        %310 = vmatpush.msra.mxu0 0.0
        %311 = vmatpush.msra.mxu0 0.0
        %312 = vmatpush.msra.mxu0 0.0
        %313 = vmatpush.msra.mxu0 0.0
        %314 = vmatpush.msra.mxu0 0.0
        %315 = vmatpush.msra.mxu0 0.0
        %316 = vmatpush.msra.mxu0 %v295
        %317 = vmatpush.msra.mxu0 %v294
        %318 = vmatpush.msra.mxu0 %v293
        %319 = vmatpush.msra.mxu0 %v292
        %320 = vmatmul.f32.gmra.mxu0 %v302
        %v321 = vpop.f32.mrf.mxu0
        %v322 = vadd.f32 %v298, %v321
        %323 = vdwg.mxu0
        %v324 = vmul.f32 %v322, 0.5
        %v325 = vmul.f32 %v322, 0.044715
        %v326 = vmul.f32 %v325, %v322
        %v327 = vmul.f32 %v326, %v322
        %v328 = vadd.f32 %v322, %v327
        %v329 = vmul.f32 %v328, 0.7978846
        %v330 = vtanh.pop %v329
        %v331 = vadd.f32 %v330, 1.0
        %v332 = vmul.f32 %v324, %v331
        %v333 = vld [vmem:[#allocation2] sm:$0xff]
        %v334 = vld [vmem:[%s283] sm:$0xff]
        %v335 = vld [vmem:[%s283 + $0x8] sm:$0xff]
        %v336 = vld [vmem:[%s283 + $0x10] sm:$0xff]
        %v337 = vld [vmem:[%s283 + $0x18] sm:$0xff]
        %v338 = vld [vmem:[%s283 + $0x20] sm:$0xff]
        %v339 = vld [vmem:[%s283 + $0x28] sm:$0xff]
        %v340 = vld [vmem:[%s283 + $0x30] sm:$0xff]
        %v341 = vld [vmem:[%s283 + $0x38] sm:$0xff]
        %v342 = vld [vmem:[%s283 + $0x40] sm:$0xff]
        %v343 = vld [vmem:[%s283 + $0x48] sm:$0xff]
        %v344 = vld [vmem:[%s283 + $0x50] sm:$0xff]
        %v345 = vld [vmem:[%s283 + $0x58] sm:$0xff]
        %v346 = vld [vmem:[%s283 + $0x60] sm:$0xff]
        %v347 = vld [vmem:[%s283 + $0x68] sm:$0xff]
        %v348 = vld [vmem:[%s283 + $0x70] sm:$0xff]
        %v349 = vld [vmem:[%s283 + $0x78] sm:$0xff]
        %350 = vmatpush.msra.mxu0 %v349
        %351 = vmatpush.msra.mxu0 %v348
        %352 = vmatpush.msra.mxu0 %v347
        %353 = vmatpush.msra.mxu0 %v346
        %354 = vmatpush.msra.mxu0 %v345
        %355 = vmatpush.msra.mxu0 %v344
        %356 = vmatpush.msra.mxu0 %v343
        %357 = vmatpush.msra.mxu0 %v342
        %358 = vmatpush.msra.mxu0 %v341
        %359 = vmatpush.msra.mxu0 %v340
        %360 = vmatpush.msra.mxu0 %v339
        %361 = vmatpush.msra.mxu0 %v338
        %362 = vmatpush.msra.mxu0 %v337
        %363 = vmatpush.msra.mxu0 %v336
        %364 = vmatpush.msra.mxu0 %v335
        %365 = vmatpush.msra.mxu0 %v334
        %366 = vmatmul.f32.gmra.mxu0 %v332
        %v367 = vpop.f32.mrf.mxu0
        %v368 = vadd.f32 0.0, %v367
        %369 = vdwg.mxu0
        %v370 = vadd.f32 %v333, %v368
        %371 = vst.msk [vmem:[#allocation2] sm:$0xff] %vm300, %v370
        // Predicated region
        $region45: #{_mlp_pallas.1} parent=39 // pred_check
          %p372 = pneg %p285
        $region46: #{_mlp_pallas.1} parent=39 // pred_check_branch
          %374 = sbr.rel (%p372) target = $region48
        $region47: #{_mlp_pallas.1} parent=39 // pred_region
          %v375 = vld [vmem:[#allocation2] sm:$0xff]
          %v376 = vld [vmem:[%s4] sm:$0x1]
          %v378 = vperm.slane %v376, 0
          %v380 = vadd.f32 %v375, %v378
          %381 = vst.msk [vmem:[%s267] sm:$0xff] %vm300, %v380
        $region48: #{_mlp_pallas.1} parent=39 // pred_fallthru
          _
        %s382 = sand.u32 %s164, 1
        %s383 = scalar_lea.sflag [#allocation4], %s382
        %s384 = sand.u32 %s164, 1
        %s385 = smul.addr %s384, 8
        %s386 = scalar_lea.vmem [#allocation3], %s385
        // Predicated region
        $region49: #{_mlp_pallas.1} parent=39 // pred_check
          %p387 = pneg %p174
        $region50: #{_mlp_pallas.1} parent=39 // pred_check_branch
          %389 = sbr.rel (%p387) target = $region52
        $region51: #{_mlp_pallas.1} parent=39 // pred_region
          %391 = vsyncadd %s383, 0
          %s392 = smul.addr %s23, 8
          %s393 = scalar_lea.hbm %s5, %s392
          %s395 = sshll.u32 %s386, 4
          %s396 = int_to_ptr.vmem [resolvable:$true] %s395
          %s397 = sshll.u32 %s393, 4
          %s398 = int_to_ptr.hbm [resolvable:$true] %s397
          %400 = dma.vmem_to_hbm [thread:$0]  %s396, 128, %s398, %s383
        $region52: #{_mlp_pallas.1} parent=39 // pred_fallthru
          _
      $region40: #{_mlp_pallas.1} parent=5 // pred_fallthru
        _
      %p401 = scmp.le.s32.totalorder 2, %s14
      // Predicated region
      $region53: #{_mlp_pallas.1} parent=5 // pred_check
        %p402 = pneg %p401
      $region54: #{_mlp_pallas.1} parent=5 // pred_check_branch
        %404 = sbr.rel (%p402) target = $region56
      $region55: #{_mlp_pallas.1} parent=5 // pred_region
        %s405 = ssub.s32 %s14, 2
        // Predicated region
        $region57: #{_mlp_pallas.1} parent=55 // pred_check
          %p406 = pneg %p180
        $region58: #{_mlp_pallas.1} parent=55 // pred_check_branch
          %408 = sbr.rel (%p406) target = $region60
        $region59: #{_mlp_pallas.1} parent=55 // pred_region
          %s409 = sand.u32 %s165, 1
          %s410 = scalar_lea.sflag [#allocation4], %s409
          %s411 = sand.u32 %s165, 1
          %s412 = smul.addr %s411, 8
          %s413 = scalar_lea.vmem [#allocation3], %s412
          %415 = dma.done %s410, 128
        $region60: #{_mlp_pallas.1} parent=55 // pred_fallthru
          _
      $region56: #{_mlp_pallas.1} parent=5 // pred_fallthru
        _
    $region6: #{_mlp_pallas.1} parent=1 // loop_footer
      %s18 = sadd.s32 1, %s14
    $region7: #{_mlp_pallas.1} parent=1 // loop_footer_branch
      %13 = sbr.rel target = $region3
    $region8: #{_mlp_pallas.1} parent=1 // loop_exit
      _
    %416 = vsyncpa [#allocation4], 1
    %s417 = scalar_lea.sflag [#allocation4], 1
    %418 = vsyncpa %s417, 1

</llo_original>
